<compile_context>
chip_gen: v5e
topology: v5e:2x2
jax: 0.10.0
libtpu: 0.0.40
codegen_flags: <defaults>
</compile_context>

<pallas_src>
import functools

import jax
import jax.numpy as jnp
import numpy as np
from jax.experimental import pallas as pl
from jax.experimental.pallas import tpu as pltpu


_INV_SQRT2 = 0.7071067811865476


def _smd_kernel(x_ref, w1_ref, b1_ref, wf_ref, bf_ref, out_ref, *,
                compute_dtype, bt):
    """One (batch-tile, C-tile) step: out[b] = Wf @ GELU(W1 @ x[b] + b1) + bf."""
    w1 = w1_ref[...]          # (E, N)  compute_dtype
    b1 = b1_ref[...]          # (E, 1)  f32 column bias
    wf = wf_ref[...]          # (K, E)  compute_dtype  (= W3 @ W2)
    bf = bf_ref[...]          # (K, 1)  f32            (= W3 @ b2 + b3)

    def one_batch(b):
        # Cast to the MXU operand dtype here (not in the wrapper) so x is read
        # from HBM exactly once in its original dtype.
        x = x_ref[b].astype(compute_dtype)                        # (N, TC)
        h = jnp.dot(w1, x, preferred_element_type=jnp.float32)    # (E, TC) f32
        h = h + b1
        # Exact erf GELU (torch.nn.GELU default).
        # TODO(synk): swap to the tanh approximation (EUP slot) only if
        # numerics allow and VALU ever becomes the binding slot.
        h = 0.5 * h * (1.0 + jax.lax.erf(h * jnp.float32(_INV_SQRT2)))
        o = jnp.dot(wf, h.astype(wf.dtype),
                    preferred_element_type=jnp.float32)           # (K, TC) f32
        o = o + bf
        out_ref[b] = o.astype(out_ref.dtype)

    if bt <= 8:
        for b in range(bt):                       # small static unroll
            one_batch(b)
    else:
        def body(b, carry):
            one_batch(b)
            return carry
        jax.lax.fori_loop(0, bt, body, 0)


def _vmem_budget_bytes(bt, tc, n, e, k, x_isz, c_isz, o_isz):
    """Accurate per-step VMEM need: only x/out blocks are double-buffered,
    grid-invariant weights are single-buffered, and the live (E,TC) f32 GELU
    intermediate (plus its compute-dtype copy) is included."""
    x_blk = 2 * bt * n * tc * x_isz
    o_blk = 2 * bt * k * tc * o_isz
    w = (e * n + k * e) * c_isz + (e + k) * 4
    h = 2 * e * tc * 4
    return x_blk + o_blk + w + h


def _vmem_cap_bytes():
    """~75% of physical VMEM: ~48 MiB on v7x (64 MiB), ~96 MiB on v5e/v6e."""
    cap = None
    try:
        cap = getattr(pltpu.get_tpu_info(), "vmem_capacity_bytes", None)
    except Exception:
        cap = None
    if not cap:
        cap = 64 * 1024 * 1024          # conservative fallback (covers v7x)
    return max(int(cap) * 3 // 4, 16 * 1024 * 1024)


def _pick_tiles(b, n, c, e, k, x_isz, c_isz, o_isz, cap):
    """Largest C tile first (lane-dense stores, contiguous DMAs), then the
    largest batch tile whose blocks fit the VMEM budget."""
    if c % 128 == 0:
        tc_cands = sorted((d for d in range(128, c + 1, 128) if c % d == 0),
                          reverse=True)
    else:
        tc_cands = [c]                  # full-dim block (no 128 constraint)
    bt_cands = sorted((d for d in range(1, b + 1) if b % d == 0), reverse=True)

    for tc in tc_cands:
        for bt in bt_cands:
            if _vmem_budget_bytes(bt, tc, n, e, k, x_isz, c_isz, o_isz) * 1.25 <= cap:
                # v7x megacore: avoid a single-step grid when the batch splits.
                if (b // bt) * (c // tc) == 1 and bt > 1:
                    smaller = [d for d in bt_cands if d < bt]
                    if smaller:
                        bt = smaller[0]
                return bt, tc
    return 1, tc_cands[-1]              # smallest blocks (rare; huge E)


def smd_forward(x, params, compute_dtype=jnp.float32, out_dtype=jnp.float32):
    """x: (B, N, C) -> (B, K*C), matching the PyTorch SMD.forward()."""
    w1, b1, w2, b2, w3, b3 = params
    B, N, C = x.shape
    E = w1.shape[0]
    K = w3.shape[0]
    f32 = jnp.float32

    # Algebraic fusion of linear2+linear3 (exact up to fp reassociation),
    # precomputed in f32:  Wf = W3 @ W2  (K, E),  bf = W3 @ b2 + b3  (K, 1).
    wf = (w3.astype(f32) @ w2.astype(f32)).astype(compute_dtype)
    bfv = (w3.astype(f32) @ b2.astype(f32) + b3.astype(f32)).reshape(K, 1)
    w1c = w1.astype(compute_dtype)
    b1c = b1.astype(f32).reshape(E, 1)
    # NOTE: x is NOT cast here; the per-tile cast happens inside the kernel.

    x_isz = jnp.dtype(x.dtype).itemsize
    c_isz = jnp.dtype(compute_dtype).itemsize
    o_isz = jnp.dtype(out_dtype).itemsize

    cap = _vmem_cap_bytes()
    BT, TC = _pick_tiles(B, N, C, E, K, x_isz, c_isz, o_isz, cap)
    grid = (B // BT, C // TC)

    # vmem_limit: block budget + weights counted once more (in case the
    # compiler double-buffers the grid-invariant blocks), with headroom.
    need = _vmem_budget_bytes(BT, TC, N, E, K, x_isz, c_isz, o_isz)
    need += (E * N + K * E) * c_isz + (E + K) * 4
    vmem_limit = int(min(max(need * 1.25, 16 * 1024 * 1024), cap))

    kernel = functools.partial(_smd_kernel, compute_dtype=compute_dtype, bt=BT)

    # TODO(synk): for very large E (e.g. 4k+) on v7x, add an "arbitrary" grid
    # axis over E-chunks (accumulate Wf_chunk @ GELU(W1_chunk @ x + b1_chunk))
    # so W1 and the (E,TC) intermediate need not be fully VMEM-resident.
    out = pl.pallas_call(
        kernel,
        out_shape=jax.ShapeDtypeStruct((B, K, C), out_dtype),
        grid_spec=pltpu.PrefetchScalarGridSpec(
            num_scalar_prefetch=0,
            grid=grid,
            in_specs=[
                pl.BlockSpec((BT, N, TC), lambda b, c: (b, 0, c)),  # x, original dtype
                pl.BlockSpec((E, N), lambda b, c: (0, 0)),          # W1 (grid-invariant)
                pl.BlockSpec((E, 1), lambda b, c: (0, 0)),          # b1 column
                pl.BlockSpec((K, E), lambda b, c: (0, 0)),          # Wf = W3 @ W2
                pl.BlockSpec((K, 1), lambda b, c: (0, 0)),          # bf = W3 @ b2 + b3
            ],
            out_specs=pl.BlockSpec((BT, K, TC), lambda b, c: (b, 0, c)),
        ),
        compiler_params=pltpu.CompilerParams(
            dimension_semantics=("parallel", "parallel"),
            vmem_limit_bytes=vmem_limit),
    )(x, w1c, b1c, wf, bfv)

    # (B, K, C) is already the transposed layout; flatten(-2,-1) is a reshape.
    return out.reshape(B, K * C)


def smd_reference(x, params):
    """Pure-JAX f32 reference matching the PyTorch forward exactly."""
    w1, b1, w2, b2, w3, b3 = params
    h = jnp.swapaxes(x, -1, -2)
    h = h @ w1.T + b1
    h = jax.nn.gelu(h, approximate=False)
    h = h @ w2.T + b2
    h = h @ w3.T + b3
    h = jnp.swapaxes(h, -1, -2)
    return h.reshape(h.shape[0], -1)


if __name__ == "__main__":
    # Small config: in_dim = N = 8 tokens, expand_scale_factor = 4,
    # k_scale_factor = 2, feature channels C = 32, batch B = 2.
    B, N, C = 2, 8, 32
    expand_scale_factor = 4
    k_scale_factor = 2
    E = N * expand_scale_factor
    K = k_scale_factor

    key = jax.random.PRNGKey(0)
    kx, k1, k2, k3, k4, k5, k6 = jax.random.split(key, 7)

    x = jax.random.normal(kx, (B, N, C), dtype=jnp.float32)

    # Deterministic synthetic parameter init (PyTorch Linear layout (out, in)).
    def uinit(k, shape, fan_in):
        bound = 1.0 / np.sqrt(fan_in)
        return jax.random.uniform(k, shape, jnp.float32, -bound, bound)

    w1 = uinit(k1, (E, N), N)
    b1 = uinit(k2, (E,), N)
    w2 = uinit(k3, (N, E), E)
    b2 = uinit(k4, (N,), E)
    w3 = uinit(k5, (K, N), N)
    b3 = uinit(k6, (K,), N)
    params = (w1, b1, w2, b2, w3, b3)

    ref = smd_reference(x, params)

    # f32 operand path: matches the reference up to the W3·W2 fp reassociation.
    out_f32 = jax.block_until_ready(smd_forward(x, params, jnp.float32))
    assert out_f32.shape == (B, K * C), out_f32.shape
    np.testing.assert_allclose(np.asarray(out_f32), np.asarray(ref),
                               rtol=1e-4, atol=1e-5)

    # bf16 MXU-operand path (f32 accumulation, in-kernel cast of x): looser tol.
    out_bf16 = jax.block_until_ready(smd_forward(x, params, jnp.bfloat16))
    np.testing.assert_allclose(np.asarray(out_bf16), np.asarray(ref),
                               rtol=3e-2, atol=3e-2)

    print("KERNEL_OK")
</pallas_src>

<mosaic_0001>
module attributes {stable_mosaic.version = 11 : i64} {
  func.func @_smd_kernel(%arg0: i32, %arg1: i32, %arg2: memref<1x8x32xf32, #tpu.memory_space<vmem>>, %arg3: memref<32x8xf32, #tpu.memory_space<vmem>>, %arg4: memref<32x1xf32, #tpu.memory_space<vmem>>, %arg5: memref<2x32xf32, #tpu.memory_space<vmem>>, %arg6: memref<2x1xf32, #tpu.memory_space<vmem>>, %arg7: memref<1x2x32xf32, #tpu.memory_space<vmem>>) attributes {dimension_semantics = [#tpu.dimension_semantics<parallel>, #tpu.dimension_semantics<parallel>], iteration_bounds = array<i64: 2, 1>, scalar_prefetch = 0 : i64, scratch_operands = 0 : i64, tpu.core_type = #tpu.core_type<tc>, window_params = [{transform_indices = @transform_0, window_bounds = array<i64: 1, 8, 32>}, {pipeline_mode = #tpu.pipeline_mode<synchronous>, transform_indices = @transform_1, window_bounds = array<i64: 32, 8>}, {pipeline_mode = #tpu.pipeline_mode<synchronous>, transform_indices = @transform_2, window_bounds = array<i64: 32, 1>}, {pipeline_mode = #tpu.pipeline_mode<synchronous>, transform_indices = @transform_3, window_bounds = array<i64: 2, 32>}, {pipeline_mode = #tpu.pipeline_mode<synchronous>, transform_indices = @transform_4, window_bounds = array<i64: 2, 1>}, {transform_indices = @transform_5, window_bounds = array<i64: 1, 2, 32>}]} {
    %c0 = arith.constant 0 : index
    %c0_0 = arith.constant 0 : index
    %0 = vector.load %arg3[%c0, %c0_0] : memref<32x8xf32, #tpu.memory_space<vmem>>, vector<32x8xf32>
    %c0_1 = arith.constant 0 : index
    %c0_2 = arith.constant 0 : index
    %1 = vector.load %arg4[%c0_1, %c0_2] : memref<32x1xf32, #tpu.memory_space<vmem>>, vector<32x1xf32>
    %c0_3 = arith.constant 0 : index
    %c0_4 = arith.constant 0 : index
    %2 = vector.load %arg5[%c0_3, %c0_4] : memref<2x32xf32, #tpu.memory_space<vmem>>, vector<2x32xf32>
    %c0_5 = arith.constant 0 : index
    %c0_6 = arith.constant 0 : index
    %3 = vector.load %arg6[%c0_5, %c0_6] : memref<2x1xf32, #tpu.memory_space<vmem>>, vector<2x1xf32>
    %c0_7 = arith.constant 0 : index
    %c0_8 = arith.constant 0 : index
    %c0_9 = arith.constant 0 : index
    %4 = vector.load %arg2[%c0_7, %c0_8, %c0_9] : memref<1x8x32xf32, #tpu.memory_space<vmem>>, vector<1x8x32xf32>
    %5 = vector.shape_cast %4 : vector<1x8x32xf32> to vector<8x32xf32>
    %cst = arith.constant dense<0.000000e+00> : vector<32x32xf32>
    %6 = tpu.matmul %0, %5, %cst {dimension_numbers = #tpu.dot_dimension_numbers<[1], [0], [0], [1], [0, 0, 1, 1], [], []>} : vector<32x8xf32>, vector<8x32xf32>, vector<32x32xf32> -> vector<32x32xf32>
    %7 = vector.broadcast %1 : vector<32x1xf32> to vector<32x32xf32>
    %8 = arith.addf %6, %7 : vector<32x32xf32>
    %cst_10 = arith.constant 5.000000e-01 : f32
    %9 = vector.broadcast %cst_10 : f32 to vector<32x32xf32>
    %10 = arith.mulf %9, %8 : vector<32x32xf32>
    %cst_11 = arith.constant 0.707106769 : f32
    %11 = vector.broadcast %cst_11 : f32 to vector<32x32xf32>
    %12 = arith.mulf %8, %11 : vector<32x32xf32>
    %13 = math.erf %12 : vector<32x32xf32>
    %cst_12 = arith.constant 1.000000e+00 : f32
    %14 = vector.broadcast %cst_12 : f32 to vector<32x32xf32>
    %15 = arith.addf %14, %13 : vector<32x32xf32>
    %16 = arith.mulf %10, %15 : vector<32x32xf32>
    %cst_13 = arith.constant dense<0.000000e+00> : vector<2x32xf32>
    %17 = tpu.matmul %2, %16, %cst_13 {dimension_numbers = #tpu.dot_dimension_numbers<[1], [0], [0], [1], [0, 0, 1, 1], [], []>} : vector<2x32xf32>, vector<32x32xf32>, vector<2x32xf32> -> vector<2x32xf32>
    %18 = vector.broadcast %3 : vector<2x1xf32> to vector<2x32xf32>
    %19 = arith.addf %17, %18 : vector<2x32xf32>
    %c0_14 = arith.constant 0 : index
    %c0_15 = arith.constant 0 : index
    %c0_16 = arith.constant 0 : index
    %20 = vector.load %arg7[%c0_14, %c0_15, %c0_16] : memref<1x2x32xf32, #tpu.memory_space<vmem>>, vector<1x2x32xf32>
    %21 = vector.shape_cast %20 : vector<1x2x32xf32> to vector<2x32xf32>
    %22 = vector.shape_cast %19 : vector<2x32xf32> to vector<1x2x32xf32>
    tpu.vector_store %arg7[%c0_14, %c0_15, %c0_16], %22 {strides = array<i32>} : memref<1x2x32xf32, #tpu.memory_space<vmem>>, vector<1x2x32xf32>,
    return
  }
  func.func @transform_0(%arg0: i32, %arg1: i32) -> (i32, i32, i32) {
    %c0_i32 = arith.constant 0 : i32
    %c0_i32_0 = arith.constant 0 : i32
    return %arg0, %c0_i32, %arg1 : i32, i32, i32
  }
  func.func @transform_1(%arg0: i32, %arg1: i32) -> (i32, i32) {
    %c0_i32 = arith.constant 0 : i32
    %c0_i32_0 = arith.constant 0 : i32
    %c0_i32_1 = arith.constant 0 : i32
    return %c0_i32, %c0_i32_0 : i32, i32
  }
  func.func @transform_2(%arg0: i32, %arg1: i32) -> (i32, i32) {
    %c0_i32 = arith.constant 0 : i32
    %c0_i32_0 = arith.constant 0 : i32
    %c0_i32_1 = arith.constant 0 : i32
    return %c0_i32, %c0_i32_0 : i32, i32
  }
  func.func @transform_3(%arg0: i32, %arg1: i32) -> (i32, i32) {
    %c0_i32 = arith.constant 0 : i32
    %c0_i32_0 = arith.constant 0 : i32
    %c0_i32_1 = arith.constant 0 : i32
    return %c0_i32, %c0_i32_0 : i32, i32
  }
  func.func @transform_4(%arg0: i32, %arg1: i32) -> (i32, i32) {
    %c0_i32 = arith.constant 0 : i32
    %c0_i32_0 = arith.constant 0 : i32
    %c0_i32_1 = arith.constant 0 : i32
    return %c0_i32, %c0_i32_0 : i32, i32
  }
  func.func @transform_5(%arg0: i32, %arg1: i32) -> (i32, i32, i32) {
    %c0_i32 = arith.constant 0 : i32
    %c0_i32_0 = arith.constant 0 : i32
    return %arg0, %c0_i32, %arg1 : i32, i32, i32
  }
}

</mosaic_0001>

<llo_original>
// kernel: tpu_custom_call.1
$region0: #{tpu_custom_call.1}
  #allocation0 [shape = 'u32[]', space=smem, size = 0x4, offset = 0x4, fixed_abs, tag = 'smem constant byte address 0x4 - core index']
  #allocation1 [shape = 'u32[72,128]{1,0:T(1,128)}', space=vmem, size = 0x9000, scoped, tag = 'internal scratch']
  %s0 = inlined_call_operand.vmem [shape: f32[2,8,32], index: 0, kind: input, shape index: {}]
  %s1 = inlined_call_operand.vmem [shape: f32[32,8], index: 1, kind: input, shape index: {}]
  %s2 = inlined_call_operand.vmem [shape: f32[32,1], index: 2, kind: input, shape index: {}]
  %s3 = inlined_call_operand.vmem [shape: f32[2,32], index: 3, kind: input, shape index: {}]
  %s4 = inlined_call_operand.vmem [shape: f32[2,1], index: 4, kind: input, shape index: {}]
  %s5 = inlined_call_operand.hbm [shape: f32[2,2,32], index: 5, kind: output, shape index: {}]
  %s6 = sld [smem:[#allocation0]]
  $region53: #{tpu_custom_call.1} parent=0
    _
  %s8 = ssub.s32 1, %s6
  %s9 = scalar_select 0, %s8, %s6
  $region1: #{tpu_custom_call.1} parent=0
    #allocation2 [shape = 'u8[2048]{0}', space=vmem, size = 0x800, scoped, tag = 'output window, operand 0']
    #allocation3 [shape = 's32[2]{0}', space=sflag, size = 0x8, scoped, tag = 'scoped memory for tpu_custom_call.1']
    %10 = vsyncpa [#allocation3], 0
    %s11 = scalar_lea.sflag [#allocation3], 1
    %12 = vsyncpa %s11, 0
    loop: start=0, step=1, limit=4
    $region2: #{tpu_custom_call.1} parent=1 // loop_pre_header
      _
    $region3: #{tpu_custom_call.1} parent=1 // loop_header
      %s14 = sphi 0, %s18
      %p15 = scmp.ge.s32.totalorder %s14, 4
      %s21 = sphi 0, %s33
      %s22 = sphi 0, %s29
      %s23 = sphi 0, %s21
      %s24 = sphi 0, %s22
      %s25 = sphi 0, %s23
      %s26 = sphi 0, %s24
      %s38 = sphi 0, %s40
      %s41 = sphi 0, %s38
      %s42 = sphi 0, %s41
      %s58 = sphi 0, %s42
      %s62 = sphi 0, %s62
      %s64 = sphi 0, %s62
      %s65 = sphi 0, %s64
      %s79 = sphi 0, %s65
      %s83 = sphi 0, %s83
      %s85 = sphi 0, %s83
      %s86 = sphi 0, %s85
      %s100 = sphi 0, %s86
      %s104 = sphi 0, %s104
      %s106 = sphi 0, %s104
      %s107 = sphi 0, %s106
      %s121 = sphi 0, %s107
      %s125 = sphi 0, %s125
      %s127 = sphi 0, %s125
      %s128 = sphi 0, %s127
      %s142 = sphi 0, %s128
      %s150 = sphi 0, %s152
      %s153 = sphi 0, %s150
      %s154 = sphi 0, %s153
      %s170 = sphi 0, %s154
    $region4: #{tpu_custom_call.1} parent=1 // loop_header_branch
      %17 = sbr.rel (%p15) target = $region8
    $region5: #{tpu_custom_call.1} parent=1 // loop_body
      %s19 = ssub.s32 %s14, 1
      %s20 = ssub.s32 %s14, 2
      %s27 = sadd.s32 1, %s22
      %p28 = scmp.ge.s32.totalorder %s27, 1
      %s29 = scalar_select %p28, 0, %s27
      %s30 = sadd.s32 1, %s21
      %s31 = scalar_select %p28, %s30, %s21
      %p32 = scmp.ge.s32.totalorder %s31, 2
      %s33 = scalar_select %p32, 0, %s31
      %s34 = ssub.s32 %s21, %s33
      %s35 = ssub.s32 %s22, %s29
      %s36 = sor.u32 %s34, %s35
      %p37 = scmp.eq.s32.totalorder %s36, 0
      %s39 = sadd.s32 %s38, 1
      %s40 = scalar_select %p37, %s38, %s39
      %p43 = pneg %p37
      %p44 = scmp.eq.s32.totalorder %s14, 1
      %p45 = por %p43, %p44
      %p46 = scmp.ne.s32.totalorder %s38, %s41
      %p47 = scmp.eq.s32.totalorder %s14, 0
      %p48 = por %p46, %p47
      %p49 = scmp.ne.s32.totalorder %s38, %s41
      %p50 = scmp.eq.s32.totalorder %s19, 1
      %p51 = por %p49, %p50
      %p52 = scmp.ne.s32.totalorder %s41, %s42
      %p53 = scmp.eq.s32.totalorder %s19, 0
      %p54 = por %p52, %p53
      %p55 = scmp.ne.s32.totalorder %s41, %s42
      %p56 = scmp.eq.s32.totalorder %s20, 1
      %p57 = por %p55, %p56
      %p59 = scmp.ne.s32.totalorder %s42, %s58
      %p60 = scmp.eq.s32.totalorder %s20, 0
      %p61 = por %p59, %p60
      %s63 = sadd.s32 %s62, 1
      %p66 = scmp.eq.s32.totalorder %s14, 1
      %p67 = scmp.ne.s32.totalorder %s62, %s64
      %p68 = scmp.eq.s32.totalorder %s14, 0
      %p69 = por %p67, %p68
      %p70 = scmp.ne.s32.totalorder %s62, %s64
      %p71 = scmp.eq.s32.totalorder %s19, 1
      %p72 = por %p70, %p71
      %p73 = scmp.ne.s32.totalorder %s64, %s65
      %p74 = scmp.eq.s32.totalorder %s19, 0
      %p75 = por %p73, %p74
      %p76 = scmp.ne.s32.totalorder %s64, %s65
      %p77 = scmp.eq.s32.totalorder %s20, 1
      %p78 = por %p76, %p77
      %p80 = scmp.ne.s32.totalorder %s65, %s79
      %p81 = scmp.eq.s32.totalorder %s20, 0
      %p82 = por %p80, %p81
      %s84 = sadd.s32 %s83, 1
      %p87 = scmp.eq.s32.totalorder %s14, 1
      %p88 = scmp.ne.s32.totalorder %s83, %s85
      %p89 = scmp.eq.s32.totalorder %s14, 0
      %p90 = por %p88, %p89
      %p91 = scmp.ne.s32.totalorder %s83, %s85
      %p92 = scmp.eq.s32.totalorder %s19, 1
      %p93 = por %p91, %p92
      %p94 = scmp.ne.s32.totalorder %s85, %s86
      %p95 = scmp.eq.s32.totalorder %s19, 0
      %p96 = por %p94, %p95
      %p97 = scmp.ne.s32.totalorder %s85, %s86
      %p98 = scmp.eq.s32.totalorder %s20, 1
      %p99 = por %p97, %p98
      %p101 = scmp.ne.s32.totalorder %s86, %s100
      %p102 = scmp.eq.s32.totalorder %s20, 0
      %p103 = por %p101, %p102
      %s105 = sadd.s32 %s104, 1
      %p108 = scmp.eq.s32.totalorder %s14, 1
      %p109 = scmp.ne.s32.totalorder %s104, %s106
      %p110 = scmp.eq.s32.totalorder %s14, 0
      %p111 = por %p109, %p110
      %p112 = scmp.ne.s32.totalorder %s104, %s106
      %p113 = scmp.eq.s32.totalorder %s19, 1
      %p114 = por %p112, %p113
      %p115 = scmp.ne.s32.totalorder %s106, %s107
      %p116 = scmp.eq.s32.totalorder %s19, 0
      %p117 = por %p115, %p116
      %p118 = scmp.ne.s32.totalorder %s106, %s107
      %p119 = scmp.eq.s32.totalorder %s20, 1
      %p120 = por %p118, %p119
      %p122 = scmp.ne.s32.totalorder %s107, %s121
      %p123 = scmp.eq.s32.totalorder %s20, 0
      %p124 = por %p122, %p123
      %s126 = sadd.s32 %s125, 1
      %p129 = scmp.eq.s32.totalorder %s14, 1
      %p130 = scmp.ne.s32.totalorder %s125, %s127
      %p131 = scmp.eq.s32.totalorder %s14, 0
      %p132 = por %p130, %p131
      %p133 = scmp.ne.s32.totalorder %s125, %s127
      %p134 = scmp.eq.s32.totalorder %s19, 1
      %p135 = por %p133, %p134
      %p136 = scmp.ne.s32.totalorder %s127, %s128
      %p137 = scmp.eq.s32.totalorder %s19, 0
      %p138 = por %p136, %p137
      %p139 = scmp.ne.s32.totalorder %s127, %s128
      %p140 = scmp.eq.s32.totalorder %s20, 1
      %p141 = por %p139, %p140
      %p143 = scmp.ne.s32.totalorder %s128, %s142
      %p144 = scmp.eq.s32.totalorder %s20, 0
      %p145 = por %p143, %p144
      %s146 = ssub.s32 %s21, %s33
      %s147 = ssub.s32 %s22, %s29
      %s148 = sor.u32 %s146, %s147
      %p149 = scmp.eq.s32.totalorder %s148, 0
      %s151 = sadd.s32 %s150, 1
      %s152 = scalar_select %p149, %s150, %s151
      %p155 = pneg %p149
      %p156 = scmp.eq.s32.totalorder %s14, 1
      %p157 = por %p155, %p156
      %p158 = scmp.ne.s32.totalorder %s150, %s153
      %p159 = scmp.eq.s32.totalorder %s14, 0
      %p160 = por %p158, %p159
      %p161 = scmp.ne.s32.totalorder %s150, %s153
      %p162 = scmp.eq.s32.totalorder %s19, 1
      %p163 = por %p161, %p162
      %p164 = scmp.ne.s32.totalorder %s153, %s154
      %p165 = scmp.eq.s32.totalorder %s19, 0
      %p166 = por %p164, %p165
      %p167 = scmp.ne.s32.totalorder %s153, %s154
      %p168 = scmp.eq.s32.totalorder %s20, 1
      %p169 = por %p167, %p168
      %p171 = scmp.ne.s32.totalorder %s154, %s170
      %p172 = scmp.eq.s32.totalorder %s20, 0
      %p173 = por %p171, %p172
      %p174 = scmp.le.s32.totalorder 1, %s14
      %p175 = scmp.lt.s32.totalorder %s14, 3
      %p176 = pnand %p174, %p175
      %p177 = pneg %p176
      // Predicated region
      $region9: #{tpu_custom_call.1} parent=5 // pred_check
        _
      $region10: #{tpu_custom_call.1} parent=5 // pred_check_branch
        %179 = sbr.rel (%p176) target = $region12
      $region11: #{tpu_custom_call.1} parent=5 // pred_region
        %s180 = ssub.s32 %s14, 1
        // Predicated region
        $region13: #{tpu_custom_call.1} parent=11 // pred_check
          %p181 = pneg %p75
        $region14: #{tpu_custom_call.1} parent=11 // pred_check_branch
          %183 = sbr.rel (%p181) target = $region16
        $region15: #{tpu_custom_call.1} parent=11 // pred_region
          _
        $region16: #{tpu_custom_call.1} parent=11 // pred_fallthru
          _
        // Predicated region
        $region17: #{tpu_custom_call.1} parent=11 // pred_check
          %p184 = pneg %p96
        $region18: #{tpu_custom_call.1} parent=11 // pred_check_branch
          %186 = sbr.rel (%p184) target = $region20
        $region19: #{tpu_custom_call.1} parent=11 // pred_region
          _
        $region20: #{tpu_custom_call.1} parent=11 // pred_fallthru
          _
        // Predicated region
        $region21: #{tpu_custom_call.1} parent=11 // pred_check
          %p187 = pneg %p117
        $region22: #{tpu_custom_call.1} parent=11 // pred_check_branch
          %189 = sbr.rel (%p187) target = $region24
        $region23: #{tpu_custom_call.1} parent=11 // pred_region
          _
        $region24: #{tpu_custom_call.1} parent=11 // pred_fallthru
          _
        // Predicated region
        $region25: #{tpu_custom_call.1} parent=11 // pred_check
          %p190 = pneg %p138
        $region26: #{tpu_custom_call.1} parent=11 // pred_check_branch
          %192 = sbr.rel (%p190) target = $region28
        $region27: #{tpu_custom_call.1} parent=11 // pred_region
          _
        $region28: #{tpu_custom_call.1} parent=11 // pred_fallthru
          _
      $region12: #{tpu_custom_call.1} parent=5 // pred_fallthru
        _
      %p193 = scmp.lt.s32.totalorder %s14, 2
      // Predicated region
      $region29: #{tpu_custom_call.1} parent=5 // pred_check
        %p194 = pneg %p193
      $region30: #{tpu_custom_call.1} parent=5 // pred_check_branch
        %196 = sbr.rel (%p194) target = $region32
      $region31: #{tpu_custom_call.1} parent=5 // pred_region
        // Predicated region
        $region33: #{tpu_custom_call.1} parent=31 // pred_check
          %p197 = pneg %p48
        $region34: #{tpu_custom_call.1} parent=31 // pred_check_branch
          %199 = sbr.rel (%p197) target = $region36
        $region35: #{tpu_custom_call.1} parent=31 // pred_region
          %p200 = scmp.lt.s32.totalorder %s21, 1
          %s201 = scalar_select %p200, %s21, 1
          %p202 = scmp.lt.s32.totalorder %s22, 0
          %s203 = scalar_select %p202, %s22, 0
          %s204 = sadd.s32 %s203, %s201
          %s205 = smul.addr %s204, 8
          %s206 = scalar_lea.vmem %s0, %s205
        $region36: #{tpu_custom_call.1} parent=31 // pred_fallthru
          _
      $region32: #{tpu_custom_call.1} parent=5 // pred_fallthru
        _
      %p207 = scmp.le.s32.totalorder 1, %s14
      %p208 = scmp.lt.s32.totalorder %s14, 3
      %p209 = pnand %p207, %p208
      %p210 = pneg %p209
      // Predicated region
      $region37: #{tpu_custom_call.1} parent=5 // pred_check
        _
      $region38: #{tpu_custom_call.1} parent=5 // pred_check_branch
        %212 = sbr.rel (%p209) target = $region40
      $region39: #{tpu_custom_call.1} parent=5 // pred_region
        %s213 = ssub.s32 %s14, 1
        %p214 = scmp.lt.s32.totalorder %s23, 1
        %s215 = scalar_select %p214, %s23, 1
        %p216 = scmp.lt.s32.totalorder %s24, 0
        %s217 = scalar_select %p216, %s24, 0
        %s218 = sadd.s32 %s217, %s215
        %s219 = smul.addr %s218, 8
        %s220 = scalar_lea.vmem %s0, %s219
        %p221 = pneg %p54
        %p222 = pneg %p51
        %p223 = pneg %p75
        %p224 = pneg %p72
        %p225 = pneg %p96
        %p226 = pneg %p93
        %p227 = pneg %p117
        %p228 = pneg %p114
        %p229 = pneg %p138
        %p230 = pneg %p135
        %p231 = pneg %p166
        %p232 = pneg %p163
        %s233 = sand.u32 %s153, 1
        %s234 = scalar_lea.sflag [#allocation3], %s233
        %s235 = sand.u32 %s153, 1
        %s236 = smul.addr %s235, 2
        %s237 = scalar_lea.vmem [#allocation2], %s236
        %p238 = scmp.lt.s32.totalorder %s23, 1
        %s239 = scalar_select %p238, %s23, 1
        %p240 = scmp.lt.s32.totalorder %s24, 0
        %s241 = scalar_select %p240, %s24, 0
        %s242 = sadd.s32 %s241, %s239
        %s243 = smul.addr %s242, 8
        %s244 = scalar_lea.vmem %s0, %s243
        %v245 = vld [vmem:[%s1] sm:$0xff]
        %v246 = vld [vmem:[%s1 + $0x8] sm:$0xff]
        %v247 = vld [vmem:[%s1 + $0x10] sm:$0xff]
        %v248 = vld [vmem:[%s1 + $0x18] sm:$0xff]
        %v249 = vld [vmem:[%s2] sm:$0xff]
        %v250 = vld [vmem:[%s2 + $0x8] sm:$0xff]
        %v251 = vld [vmem:[%s2 + $0x10] sm:$0xff]
        %v252 = vld [vmem:[%s2 + $0x18] sm:$0xff]
        %v253 = vld [vmem:[%s3] sm:$0x3]
        %v254 = vld [vmem:[%s4] sm:$0x3]
        %v255 = vld [vmem:[%s244] sm:$0xff]
        %257 = vset.pattern.permute.xlu0 0
        %258 = vperm.xlu0 %257, %v249
        %v259 = vpop.permute.xlu0 %258
        %262 = vset.pattern.permute.xlu0 0
        %263 = vperm.xlu0 %262, %v250
        %v264 = vpop.permute.xlu0 %263
        %267 = vset.pattern.permute.xlu0 0
        %268 = vperm.xlu0 %267, %v251
        %v269 = vpop.permute.xlu0 %268
        %272 = vset.pattern.permute.xlu0 0
        %273 = vperm.xlu0 %272, %v252
        %v274 = vpop.permute.xlu0 %273
        %vm276 = vcmask 64512
        %v278 = vsel %vm276, %v245, 0
        %v281 = vsel %vm276, %v246, 0
        %v284 = vsel %vm276, %v247, 0
        %v287 = vsel %vm276, %v248, 0
        %289 = vmatpush.msra.mxu0 0.0
        %290 = vmatpush.msra.mxu0 0.0
        %291 = vmatpush.msra.mxu0 0.0
        %292 = vmatpush.msra.mxu0 0.0
        %293 = vmatpush.msra.mxu0 0.0
        %294 = vmatpush.msra.mxu0 0.0
        %295 = vmatpush.msra.mxu0 0.0
        %296 = vmatpush.msra.mxu0 0.0
        %297 = vmatpush.msra.mxu0 0.0
        %298 = vmatpush.msra.mxu0 0.0
        %299 = vmatpush.msra.mxu0 0.0
        %300 = vmatpush.msra.mxu0 0.0
        %301 = vmatpush.msra.mxu0 0.0
        %302 = vmatpush.msra.mxu0 0.0
        %303 = vmatpush.msra.mxu0 0.0
        %304 = vmatpush.msra.mxu0 %v255
        %305 = vmatmul.f32.gmra.mxu0 %v278
        %v306 = vpop.f32.mrf.mxu0
        %v307 = vadd.f32 %v259, %v306
        %308 = vmatmul.f32.gmra.mxu0 %v281
        %v309 = vpop.f32.mrf.mxu0
        %v310 = vadd.f32 %v264, %v309
        %311 = vmatmul.f32.gmra.mxu0 %v284
        %v312 = vpop.f32.mrf.mxu0
        %v313 = vadd.f32 %v269, %v312
        %314 = vmatmul.f32.gmra.mxu0 %v287
        %v315 = vpop.f32.mrf.mxu0
        %v316 = vadd.f32 %v274, %v315
        %317 = vdwg.mxu0
        %v318 = vmul.f32 %v307, 0.5
        %v319 = vmul.f32 %v310, 0.5
        %v320 = vmul.f32 %v313, 0.5
        %v321 = vmul.f32 %v316, 0.5
        %v322 = vmul.f32 %v307, 0.70710677
        %v323 = vmul.f32 %v310, 0.70710677
        %v324 = vmul.f32 %v313, 0.70710677
        %v325 = vmul.f32 %v316, 0.70710677
        %v326 = vmul.f32 %v322, %v322
        %v327 = vmin.f32 16.0, %v326
        %v328 = vmul.f32 %v327, 2.1237322e-06
        %v329 = vadd.f32 %v328, 0.00028619796
        %v330 = vmul.f32 %v327, %v329
        %v331 = vadd.f32 %v330, 0.0036580483
        %v332 = vmul.f32 %v327, %v331
        %v333 = vadd.f32 %v332, 0.05243302
        %v334 = vmul.f32 %v327, %v333
        %v335 = vadd.f32 %v334, 0.18741608
        %v336 = vmul.f32 %v327, %v335
        %v337 = vadd.f32 %v336, 1.1283791
        %v338 = vmul.f32 %v322, %v337
        %v339 = vmul.f32 %v327, 3.8918573e-05
        %v340 = vadd.f32 %v339, 0.001143296
        %v341 = vmul.f32 %v327, %v340
        %v342 = vadd.f32 %v341, 0.014752088
        %v343 = vmul.f32 %v327, %v342
        %v344 = vadd.f32 %v343, 0.112945676
        %v345 = vmul.f32 %v327, %v344
        %v346 = vadd.f32 %v345, 0.4994258
        %v347 = vmul.f32 %v327, %v346
        %v348 = vadd.f32 %v347, 1.0
        %v349 = vrcp.pop %v348
        %v350 = vmul.f32 %v348, %v349
        %v351 = vsub.f32 1.0, %v350
        %v352 = vmul.f32 %v349, %v351
        %v353 = vadd.f32 %v349, %v352
        %vm354 = vweird.f32 %v348
        %vm355 = vweird.f32 %v349
        %vm356 = vmor %vm354, %vm355
        %v357 = vsel %vm356, %v349, %v353
        %v358 = vand.u32 2147483647, %v348
        %vm359 = vcmp.eq.f32.partialorder %v358, 8.507059e+37
        %v360 = vand.u32 %v348, 2147483648
        %v361 = vor.u32 1.1754944e-38, %v360
        %v362 = vsel %vm359, %v361, %v357
        %v363 = vmul.f32 %v338, %v362
        %v364 = vmin.f32 %v363, 1.0
        %v365 = vmax.f32 %v364, -1.0
        %v366 = vmul.f32 %v323, %v323
        %v367 = vmin.f32 16.0, %v366
        %v368 = vmul.f32 %v367, 2.1237322e-06
        %v369 = vadd.f32 %v368, 0.00028619796
        %v370 = vmul.f32 %v367, %v369
        %v371 = vadd.f32 %v370, 0.0036580483
        %v372 = vmul.f32 %v367, %v371
        %v373 = vadd.f32 %v372, 0.05243302
        %v374 = vmul.f32 %v367, %v373
        %v375 = vadd.f32 %v374, 0.18741608
        %v376 = vmul.f32 %v367, %v375
        %v377 = vadd.f32 %v376, 1.1283791
        %v378 = vmul.f32 %v323, %v377
        %v379 = vmul.f32 %v367, 3.8918573e-05
        %v380 = vadd.f32 %v379, 0.001143296
        %v381 = vmul.f32 %v367, %v380
        %v382 = vadd.f32 %v381, 0.014752088
        %v383 = vmul.f32 %v367, %v382
        %v384 = vadd.f32 %v383, 0.112945676
        %v385 = vmul.f32 %v367, %v384
        %v386 = vadd.f32 %v385, 0.4994258
        %v387 = vmul.f32 %v367, %v386
        %v388 = vadd.f32 %v387, 1.0
        %v389 = vrcp.pop %v388
        %v390 = vmul.f32 %v388, %v389
        %v391 = vsub.f32 1.0, %v390
        %v392 = vmul.f32 %v389, %v391
        %v393 = vadd.f32 %v389, %v392
        %vm394 = vweird.f32 %v388
        %vm395 = vweird.f32 %v389
        %vm396 = vmor %vm394, %vm395
        %v397 = vsel %vm396, %v389, %v393
        %v398 = vand.u32 2147483647, %v388
        %vm399 = vcmp.eq.f32.partialorder %v398, 8.507059e+37
        %v400 = vand.u32 %v388, 2147483648
        %v401 = vor.u32 1.1754944e-38, %v400
        %v402 = vsel %vm399, %v401, %v397
        %v403 = vmul.f32 %v378, %v402
        %v404 = vmin.f32 %v403, 1.0
        %v405 = vmax.f32 %v404, -1.0
        %v406 = vmul.f32 %v324, %v324
        %v407 = vmin.f32 16.0, %v406
        %v408 = vmul.f32 %v407, 2.1237322e-06
        %v409 = vadd.f32 %v408, 0.00028619796
        %v410 = vmul.f32 %v407, %v409
        %v411 = vadd.f32 %v410, 0.0036580483
        %v412 = vmul.f32 %v407, %v411
        %v413 = vadd.f32 %v412, 0.05243302
        %v414 = vmul.f32 %v407, %v413
        %v415 = vadd.f32 %v414, 0.18741608
        %v416 = vmul.f32 %v407, %v415
        %v417 = vadd.f32 %v416, 1.1283791
        %v418 = vmul.f32 %v324, %v417
        %v419 = vmul.f32 %v407, 3.8918573e-05
        %v420 = vadd.f32 %v419, 0.001143296
        %v421 = vmul.f32 %v407, %v420
        %v422 = vadd.f32 %v421, 0.014752088
        %v423 = vmul.f32 %v407, %v422
        %v424 = vadd.f32 %v423, 0.112945676
        %v425 = vmul.f32 %v407, %v424
        %v426 = vadd.f32 %v425, 0.4994258
        %v427 = vmul.f32 %v407, %v426
        %v428 = vadd.f32 %v427, 1.0
        %v429 = vrcp.pop %v428
        %v430 = vmul.f32 %v428, %v429
        %v431 = vsub.f32 1.0, %v430
        %v432 = vmul.f32 %v429, %v431
        %v433 = vadd.f32 %v429, %v432
        %vm434 = vweird.f32 %v428
        %vm435 = vweird.f32 %v429
        %vm436 = vmor %vm434, %vm435
        %v437 = vsel %vm436, %v429, %v433
        %v438 = vand.u32 2147483647, %v428
        %vm439 = vcmp.eq.f32.partialorder %v438, 8.507059e+37
        %v440 = vand.u32 %v428, 2147483648
        %v441 = vor.u32 1.1754944e-38, %v440
        %v442 = vsel %vm439, %v441, %v437
        %v443 = vmul.f32 %v418, %v442
        %v444 = vmin.f32 %v443, 1.0
        %v445 = vmax.f32 %v444, -1.0
        %v446 = vmul.f32 %v325, %v325
        %v447 = vmin.f32 16.0, %v446
        %v448 = vmul.f32 %v447, 2.1237322e-06
        %v449 = vadd.f32 %v448, 0.00028619796
        %v450 = vmul.f32 %v447, %v449
        %v451 = vadd.f32 %v450, 0.0036580483
        %v452 = vmul.f32 %v447, %v451
        %v453 = vadd.f32 %v452, 0.05243302
        %v454 = vmul.f32 %v447, %v453
        %v455 = vadd.f32 %v454, 0.18741608
        %v456 = vmul.f32 %v447, %v455
        %v457 = vadd.f32 %v456, 1.1283791
        %v458 = vmul.f32 %v325, %v457
        %v459 = vmul.f32 %v447, 3.8918573e-05
        %v460 = vadd.f32 %v459, 0.001143296
        %v461 = vmul.f32 %v447, %v460
        %v462 = vadd.f32 %v461, 0.014752088
        %v463 = vmul.f32 %v447, %v462
        %v464 = vadd.f32 %v463, 0.112945676
        %v465 = vmul.f32 %v447, %v464
        %v466 = vadd.f32 %v465, 0.4994258
        %v467 = vmul.f32 %v447, %v466
        %v468 = vadd.f32 %v467, 1.0
        %v469 = vrcp.pop %v468
        %v470 = vmul.f32 %v468, %v469
        %v471 = vsub.f32 1.0, %v470
        %v472 = vmul.f32 %v469, %v471
        %v473 = vadd.f32 %v469, %v472
        %vm474 = vweird.f32 %v468
        %vm475 = vweird.f32 %v469
        %vm476 = vmor %vm474, %vm475
        %v477 = vsel %vm476, %v469, %v473
        %v478 = vand.u32 2147483647, %v468
        %vm479 = vcmp.eq.f32.partialorder %v478, 8.507059e+37
        %v480 = vand.u32 %v468, 2147483648
        %v481 = vor.u32 1.1754944e-38, %v480
        %v482 = vsel %vm479, %v481, %v477
        %v483 = vmul.f32 %v458, %v482
        %v484 = vmin.f32 %v483, 1.0
        %v485 = vmax.f32 %v484, -1.0
        %v486 = vadd.f32 %v365, 1.0
        %v487 = vadd.f32 %v405, 1.0
        %v488 = vadd.f32 %v445, 1.0
        %v489 = vadd.f32 %v485, 1.0
        %v490 = vmul.f32 %v318, %v486
        %v491 = vmul.f32 %v319, %v487
        %v492 = vmul.f32 %v320, %v488
        %v493 = vmul.f32 %v321, %v489
        %495 = vset.pattern.permute.xlu0 0
        %496 = vperm.xlu0 %495, %v254
        %v497 = vpop.permute.xlu0 %496
        %vm499 = vcmask 261120
        %v501 = vsel %vm499, %v253, 0
        %503 = vmatpush.msra.mxu0 0.0
        %504 = vmatpush.msra.mxu0 0.0
        %505 = vmatpush.msra.mxu0 0.0
        %506 = vmatpush.msra.mxu0 0.0
        %507 = vmatpush.msra.mxu0 0.0
        %508 = vmatpush.msra.mxu0 0.0
        %509 = vmatpush.msra.mxu0 0.0
        %510 = vmatpush.msra.mxu0 0.0
        %511 = vmatpush.msra.mxu0 0.0
        %512 = vmatpush.msra.mxu0 0.0
        %513 = vmatpush.msra.mxu0 0.0
        %514 = vmatpush.msra.mxu0 0.0
        %515 = vmatpush.msra.mxu0 %v493
        %516 = vmatpush.msra.mxu0 %v492
        %517 = vmatpush.msra.mxu0 %v491
        %518 = vmatpush.msra.mxu0 %v490
        %519 = vmatmul.f32.gmra.mxu0 %v501
        %v520 = vpop.f32.mrf.mxu0
        %v521 = vadd.f32 %v497, %v520
        %522 = vdwg.mxu0
        %vm523 = vcmask 254976
        %524 = vst.msk [vmem:[%s237] sm:$0x3] %vm523, %v521
        %s525 = sand.u32 %s153, 1
        %s526 = scalar_lea.sflag [#allocation3], %s525
        %s527 = sand.u32 %s153, 1
        %s528 = smul.addr %s527, 2
        %s529 = scalar_lea.vmem [#allocation2], %s528
        // Predicated region
        $region41: #{tpu_custom_call.1} parent=39 // pred_check
          %p530 = pneg %p163
        $region42: #{tpu_custom_call.1} parent=39 // pred_check_branch
          %532 = sbr.rel (%p530) target = $region44
        $region43: #{tpu_custom_call.1} parent=39 // pred_region
          %534 = vsyncadd %s526, 0
          %s535 = sadd.s32 %s24, %s23
          %s536 = smul.addr %s535, 2
          %s537 = scalar_lea.hbm %s5, %s536
          %s539 = sshll.u32 %s529, 4
          %s540 = int_to_ptr.vmem [resolvable:$true] %s539
          %s541 = sshll.u32 %s537, 4
          %s542 = int_to_ptr.hbm [resolvable:$true] %s541
          %544 = dma.vmem_to_hbm [thread:$0]  %s540, 32, %s542, %s526
        $region44: #{tpu_custom_call.1} parent=39 // pred_fallthru
          _
      $region40: #{tpu_custom_call.1} parent=5 // pred_fallthru
        _
      %p545 = scmp.le.s32.totalorder 2, %s14
      // Predicated region
      $region45: #{tpu_custom_call.1} parent=5 // pred_check
        %p546 = pneg %p545
      $region46: #{tpu_custom_call.1} parent=5 // pred_check_branch
        %548 = sbr.rel (%p546) target = $region48
      $region47: #{tpu_custom_call.1} parent=5 // pred_region
        %s549 = ssub.s32 %s14, 2
        // Predicated region
        $region49: #{tpu_custom_call.1} parent=47 // pred_check
          %p550 = pneg %p169
        $region50: #{tpu_custom_call.1} parent=47 // pred_check_branch
          %552 = sbr.rel (%p550) target = $region52
        $region51: #{tpu_custom_call.1} parent=47 // pred_region
          %s553 = sand.u32 %s154, 1
          %s554 = scalar_lea.sflag [#allocation3], %s553
          %s555 = sand.u32 %s154, 1
          %s556 = smul.addr %s555, 2
          %s557 = scalar_lea.vmem [#allocation2], %s556
          %559 = dma.done %s554, 32
        $region52: #{tpu_custom_call.1} parent=47 // pred_fallthru
          _
      $region48: #{tpu_custom_call.1} parent=5 // pred_fallthru
        _
    $region6: #{tpu_custom_call.1} parent=1 // loop_footer
      %s18 = sadd.s32 1, %s14
    $region7: #{tpu_custom_call.1} parent=1 // loop_footer_branch
      %13 = sbr.rel target = $region3
    $region8: #{tpu_custom_call.1} parent=1 // loop_exit
      _
    %560 = vsyncpa [#allocation3], 1
    %s561 = scalar_lea.sflag [#allocation3], 1
    %562 = vsyncpa %s561, 1

</llo_original>
